<compile_context>
chip_gen: v7x
topology: tpu7x:2x2x1
jax: 0.10.0
libtpu: 0.0.40
codegen_flags: <defaults>
</compile_context>

<pallas_src>
import jax
import jax.numpy as jnp
from jax import lax
from jax.experimental import pallas as pl
from jax.experimental.pallas import tpu as pltpu


# Contract the minor (last) dim of both operands: W1 (out,in) x x (TB,in)
# -> (out, TB).  Standard "NT" matmul, handled directly by the MXU.
_NT_DIMS = (((1,), (1,)), ((), ()))

_TB_MAX = 16 * 1024      # rows per batch tile; keeps the padded working set
                         # well under v7x's 32 MiB default scoped VMEM
_TB_ALIGN = 256          # lane/MXU-friendly tile multiple on all generations
_MIN_STEP_ROWS = 2048    # don't split the batch below ~256 KiB of x per step


def _round_up(n, m):
    return ((n + m - 1) // m) * m


def _mlp_kernel(x_ref, w1_ref, b1_ref, w2_ref, b2_ref, o_ref):
    # x_ref:  (TB, dim)   one batch tile, natural (row-major) layout
    # w1_ref: (dim, dim)  fc1.weight in PyTorch (out, in) layout (resident)
    # b1_ref: (dim, 1)    fc1.bias as a column (resident)
    # w2_ref: (dim, 1)    fc2.weight as a column (resident)
    # b2_ref: (1, 1)      fc2.bias, SMEM scalar
    # o_ref:  (1, TB)     lane-dense output tile (y transposed)

    # h_T = relu(W1 @ x_T + b1): batch ends up on lanes.
    h = lax.dot_general(w1_ref[...], x_ref[...], _NT_DIMS,
                        preferred_element_type=jnp.float32)        # (dim, TB)
    h = jnp.maximum(h + b1_ref[...], 0.0)                          # lane bcast

    # fc2 (single output unit): VPU multiply + XLU sublane-sum; lane-dense.
    y = jnp.sum(h * w2_ref[...], axis=0, keepdims=True)            # (1, TB)
    o_ref[...] = y + b2_ref[0, 0]                                  # SMEM scalar


def prepare_params(w1_pt, b1_pt, w2_pt, b2_pt):
    """One-time conversion from PyTorch Linear layout to kernel layout."""
    dim = w1_pt.shape[0]
    w1 = jnp.asarray(w1_pt, jnp.float32)                   # (dim, dim), as-is
    b1 = jnp.asarray(b1_pt, jnp.float32).reshape(dim, 1)   # column (lane bcast)
    w2 = jnp.asarray(w2_pt, jnp.float32).reshape(dim, 1)   # column (lane bcast)
    b2 = jnp.asarray(b2_pt, jnp.float32).reshape(1, 1)     # SMEM scalar
    return w1, b1, w2, b2


def _choose_batch_tile(B):
    """B-adaptive tile: big enough to amortize per-step overhead, small enough
    for every generation's scoped VMEM, with an even step count (v7x megacore)
    and >= 4 steps for pipelining at large B."""
    if B <= 2 * _MIN_STEP_ROWS:
        # Whole batch in one tile: tiny problem, overhead-bound anyway.
        # round_up to 8 keeps the (8,128) sublane rule without any padding copy.
        return _round_up(B, 8)
    b_ceil = _round_up(B, _TB_ALIGN)
    n_steps = pl.cdiv(b_ceil, _TB_MAX)
    if b_ceil >= 4 * _MIN_STEP_ROWS:
        n_steps = max(n_steps, 4)        # keep the input DMA overlapped
    else:
        n_steps = max(n_steps, 2)
    if n_steps % 2:
        n_steps += 1                     # even step count -> both v7x TCs busy
    tb = _round_up(pl.cdiv(b_ceil, n_steps), _TB_ALIGN)
    return min(tb, _TB_MAX)


def _vmem_limit_bytes(tb, dim):
    """Scoped-VMEM budget assuming the (tb, dim) f32 x tile is lane-padded to
    128 lanes (4x the logical bytes at dim=32), double-buffered, plus f32
    intermediates and the (1, tb) output tile."""
    lanes = max(_round_up(dim, 128), 128)
    x_bufs = 2 * tb * lanes * 4                   # double-buffered x tile
    interm = 2 * tb * _round_up(dim, 8) * 4       # h, h*w2 (f32)
    out_bufs = 2 * 8 * tb * 4                     # (1, tb) tile, sublane-padded
    est = x_bufs + interm + out_bufs + (4 << 20)  # weights + headroom
    return int(min(max(est, 24 << 20), 48 << 20))  # safe on v5e/v6e/v7x


def ne_mot_model_forward(x, params, *, block_b=None):
    """Pallas forward pass.  x: (B, dim) float32 -> (B, 1) float32."""
    w1, b1, w2, b2 = params
    B, dim = x.shape
    assert w1.shape == (dim, dim)

    if block_b is None:
        tb = _choose_batch_tile(B)
    else:
        tb = max(_TB_ALIGN, _round_up(block_b, _TB_ALIGN))

    grid_b = pl.cdiv(B, tb)          # ragged last tile handled by Pallas;
    out_w = grid_b * tb              # no whole-array jnp.pad of x.

    yt = pl.pallas_call(
        _mlp_kernel,
        out_shape=jax.ShapeDtypeStruct((1, out_w), jnp.float32),
        grid=(grid_b,),
        in_specs=[
            pl.BlockSpec((tb, dim), lambda i: (i, 0)),            # x: streamed tiles
            pl.BlockSpec((dim, dim), lambda i: (0, 0)),           # W1: resident
            pl.BlockSpec((dim, 1), lambda i: (0, 0)),             # b1: resident
            pl.BlockSpec((dim, 1), lambda i: (0, 0)),             # w2: resident
            pl.BlockSpec(memory_space=pltpu.MemorySpace.SMEM),    # b2: SMEM scalar
        ],
        out_specs=pl.BlockSpec((1, tb), lambda i: (0, i)),        # lane-dense slab
        compiler_params=pltpu.CompilerParams(
            dimension_semantics=("parallel",),      # shard batch tiles (v7x TCs)
            vmem_limit_bytes=_vmem_limit_bytes(tb, dim),
        ),
    )(x, w1, b1, w2, b2)

    # Present PyTorch's (B, 1); kernel-side slab is (1, out_w), lane-dense.
    return yt[0, :B].reshape(B, 1)


def _reference_forward(x, w1_pt, b1_pt, w2_pt, b2_pt):
    """Plain-JAX reference matching PyTorch Linear semantics (full-precision
    matmuls so the comparison isn't dominated by XLA's default bf16 passes)."""
    h = jnp.maximum(
        jnp.dot(x, w1_pt.T, precision=lax.Precision.HIGHEST) + b1_pt, 0.0)
    return jnp.dot(h, w2_pt.T, precision=lax.Precision.HIGHEST) + b2_pt


if __name__ == "__main__":
    dim = 32

    key = jax.random.PRNGKey(0)
    kx, kw1, kb1, kw2, kb2, kx2, kx3 = jax.random.split(key, 7)

    # Deterministic params mimicking nn.Linear's uniform(-1/sqrt(fan_in), ...).
    bound = 1.0 / jnp.sqrt(dim)
    w1_pt = jax.random.uniform(kw1, (dim, dim), jnp.float32, -bound, bound)
    b1_pt = jax.random.uniform(kb1, (dim,), jnp.float32, -bound, bound)
    w2_pt = jax.random.uniform(kw2, (1, dim), jnp.float32, -bound, bound)
    b2_pt = jax.random.uniform(kb2, (1,), jnp.float32, -bound, bound)

    params = prepare_params(w1_pt, b1_pt, w2_pt, b2_pt)   # one-time layout prep

    def _check(x, name, **kw):
        y = jax.block_until_ready(ne_mot_model_forward(x, params, **kw))
        ref = _reference_forward(x, w1_pt, b1_pt, w2_pt, b2_pt)
        assert y.shape == (x.shape[0], 1), (name, y.shape)
        err = float(jnp.max(jnp.abs(y - ref)))
        assert err < 1e-4, f"{name}: max abs err {err}"

    # Small case (typical module usage; entirely overhead-bound).
    _check(jax.random.normal(kx, (8, dim), jnp.float32), "small")

    # Non-multiple batch, single tile (no padding copy of x).
    _check(jax.random.normal(kx2, (600, dim), jnp.float32), "single-tile ragged")

    # Force a multi-step grid with a ragged final tile (exercises the tiled,
    # pipelined path that large-B auto-tiling would use).
    _check(jax.random.normal(kx3, (1000, dim), jnp.float32), "multi-step ragged",
           block_b=256)

    print("KERNEL_OK")
</pallas_src>

<mosaic_0001>
module attributes {stable_mosaic.version = 11 : i64} {
  func.func @_mlp_kernel(%arg0: i32, %arg1: memref<8x32xf32, #tpu.memory_space<vmem>>, %arg2: memref<32x32xf32, #tpu.memory_space<vmem>>, %arg3: memref<32x1xf32, #tpu.memory_space<vmem>>, %arg4: memref<32x1xf32, #tpu.memory_space<vmem>>, %arg5: memref<1x1xf32, #tpu.memory_space<smem>>, %arg6: memref<1x8xf32, #tpu.memory_space<vmem>>) attributes {dimension_semantics = [#tpu.dimension_semantics<parallel>], iteration_bounds = array<i64: 1>, scalar_prefetch = 0 : i64, scratch_operands = 0 : i64, tpu.core_type = #tpu.core_type<tc>, window_params = [{transform_indices = @transform_0, window_bounds = array<i64: 8, 32>}, {pipeline_mode = #tpu.pipeline_mode<synchronous>, transform_indices = @transform_1, window_bounds = array<i64: 32, 32>}, {pipeline_mode = #tpu.pipeline_mode<synchronous>, transform_indices = @transform_2, window_bounds = array<i64: 32, 1>}, {pipeline_mode = #tpu.pipeline_mode<synchronous>, transform_indices = @transform_3, window_bounds = array<i64: 32, 1>}, {transform_indices = @transform_4, window_bounds = array<i64: 1, 1>}, {transform_indices = @transform_5, window_bounds = array<i64: 1, 8>}]} {
    %c0 = arith.constant 0 : index
    %c0_0 = arith.constant 0 : index
    %0 = vector.load %arg2[%c0, %c0_0] : memref<32x32xf32, #tpu.memory_space<vmem>>, vector<32x32xf32>
    %c0_1 = arith.constant 0 : index
    %c0_2 = arith.constant 0 : index
    %1 = vector.load %arg1[%c0_1, %c0_2] : memref<8x32xf32, #tpu.memory_space<vmem>>, vector<8x32xf32>
    %cst = arith.constant dense<0.000000e+00> : vector<32x8xf32>
    %2 = tpu.matmul %0, %1, %cst {dimension_numbers = #tpu.dot_dimension_numbers<[1], [1], [0], [0], [0, 0, 1, 0], [], []>} : vector<32x32xf32>, vector<8x32xf32>, vector<32x8xf32> -> vector<32x8xf32>
    %c0_3 = arith.constant 0 : index
    %c0_4 = arith.constant 0 : index
    %3 = vector.load %arg3[%c0_3, %c0_4] : memref<32x1xf32, #tpu.memory_space<vmem>>, vector<32x1xf32>
    %4 = vector.broadcast %3 : vector<32x1xf32> to vector<32x8xf32>
    %5 = arith.addf %2, %4 : vector<32x8xf32>
    %cst_5 = arith.constant 0.000000e+00 : f32
    %6 = vector.broadcast %cst_5 : f32 to vector<32x8xf32>
    %7 = arith.maximumf %5, %6 : vector<32x8xf32>
    %c0_6 = arith.constant 0 : index
    %c0_7 = arith.constant 0 : index
    %8 = vector.load %arg4[%c0_6, %c0_7] : memref<32x1xf32, #tpu.memory_space<vmem>>, vector<32x1xf32>
    %9 = vector.broadcast %8 : vector<32x1xf32> to vector<32x8xf32>
    %10 = arith.mulf %7, %9 : vector<32x8xf32>
    %cst_8 = arith.constant dense<0.000000e+00> : vector<8xf32>
    %11 = vector.multi_reduction <add>, %10, %cst_8 [0] : vector<32x8xf32> to vector<8xf32>
    %12 = vector.shape_cast %11 : vector<8xf32> to vector<1x8xf32>
    %c0_9 = arith.constant 0 : index
    %c0_10 = arith.constant 0 : index
    %13 = memref.load %arg5[%c0_9, %c0_10] : memref<1x1xf32, #tpu.memory_space<smem>>
    %14 = vector.broadcast %13 : f32 to vector<1x8xf32>
    %15 = arith.addf %12, %14 : vector<1x8xf32>
    %c0_11 = arith.constant 0 : index
    %c0_12 = arith.constant 0 : index
    %16 = vector.load %arg6[%c0_11, %c0_12] : memref<1x8xf32, #tpu.memory_space<vmem>>, vector<1x8xf32>
    tpu.vector_store %arg6[%c0_11, %c0_12], %15 {strides = array<i32>} : memref<1x8xf32, #tpu.memory_space<vmem>>, vector<1x8xf32>,
    return
  }
  func.func @transform_0(%arg0: i32) -> (i32, i32) {
    %c0_i32 = arith.constant 0 : i32
    %c0_i32_0 = arith.constant 0 : i32
    return %arg0, %c0_i32 : i32, i32
  }
  func.func @transform_1(%arg0: i32) -> (i32, i32) {
    %c0_i32 = arith.constant 0 : i32
    %c0_i32_0 = arith.constant 0 : i32
    %c0_i32_1 = arith.constant 0 : i32
    return %c0_i32, %c0_i32_0 : i32, i32
  }
  func.func @transform_2(%arg0: i32) -> (i32, i32) {
    %c0_i32 = arith.constant 0 : i32
    %c0_i32_0 = arith.constant 0 : i32
    %c0_i32_1 = arith.constant 0 : i32
    return %c0_i32, %c0_i32_0 : i32, i32
  }
  func.func @transform_3(%arg0: i32) -> (i32, i32) {
    %c0_i32 = arith.constant 0 : i32
    %c0_i32_0 = arith.constant 0 : i32
    %c0_i32_1 = arith.constant 0 : i32
    return %c0_i32, %c0_i32_0 : i32, i32
  }
  func.func @transform_4(%arg0: i32) -> (i32, i32) {
    %c0_i32 = arith.constant 0 : i32
    %c0_i32_0 = arith.constant 0 : i32
    %c0_i32_1 = arith.constant 0 : i32
    return %c0_i32, %c0_i32_0 : i32, i32
  }
  func.func @transform_5(%arg0: i32) -> (i32, i32) {
    %c0_i32 = arith.constant 0 : i32
    %c0_i32_0 = arith.constant 0 : i32
    return %c0_i32, %arg0 : i32, i32
  }
}

</mosaic_0001>

<llo_original>
// kernel: tpu_custom_call.1
$region0: #{tpu_custom_call.1}
  #allocation0 [shape = 'u32[]', space=smem, size = 0x4, offset = 0x4, fixed_abs, tag = 'smem constant byte address 0x4 - core index']
  #allocation1 [shape = 'u32[144,128]{1,0:T(1,128)}', space=vmem, size = 0x12000, scoped, tag = 'internal scratch']
  #allocation2 [shape = 'f32[1,1]{1,0:T(1,128)S(6)}', space=smem, size = 0x200, scoped, tag = 'scoped memory for tpu_custom_call.1']
  %s0 = inlined_call_operand.vmem [shape: f32[8,32], index: 0, kind: input, shape index: {}]
  %s1 = inlined_call_operand.vmem [shape: f32[32,32], index: 1, kind: input, shape index: {}]
  %s2 = inlined_call_operand.vmem [shape: f32[32,1], index: 2, kind: input, shape index: {}]
  %s3 = inlined_call_operand.vmem [shape: f32[32,1], index: 3, kind: input, shape index: {}]
  %s4 = inlined_call_operand.<no memory space> [shape: f32[1,1], index: 4, kind: input, shape index: {}]
  %s5 = inlined_call_operand.hbm [shape: f32[1,8], index: 5, kind: output, shape index: {}]
  %s6 = sld [smem:[#allocation0]]
  $region30: #{tpu_custom_call.1} parent=0
    _
  %s8 = ssub.s32 1, %s6
  %s9 = scalar_select 0, %s8, %s6
  %10 = sst [smem:[#allocation2]] %s4
  $region1: #{tpu_custom_call.1} parent=0
    #allocation3 [shape = 'u8[512]{0}', space=vmem, size = 0x400, scoped, tag = 'output window, operand 0, single buffered']
    #allocation4 [shape = 's32[1]{0}', space=sflag, size = 0x4, scoped, tag = 'scoped memory for tpu_custom_call.1']
    %11 = vsyncpa [#allocation4], 0
    // Predicated region
    $region2: #{tpu_custom_call.1} parent=1 // pred_check
      _
    $region3: #{tpu_custom_call.1} parent=1 // pred_check_branch
      %13 = sbr.rel (0) target = $region5
    $region4: #{tpu_custom_call.1} parent=1 // pred_region
      _
    $region5: #{tpu_custom_call.1} parent=1 // pred_fallthru
      _
    // Predicated region
    $region6: #{tpu_custom_call.1} parent=1 // pred_check
      _
    $region7: #{tpu_custom_call.1} parent=1 // pred_check_branch
      %15 = sbr.rel (0) target = $region9
    $region8: #{tpu_custom_call.1} parent=1 // pred_region
      _
    $region9: #{tpu_custom_call.1} parent=1 // pred_fallthru
      _
    // Predicated region
    $region10: #{tpu_custom_call.1} parent=1 // pred_check
      _
    $region11: #{tpu_custom_call.1} parent=1 // pred_check_branch
      %17 = sbr.rel (0) target = $region13
    $region12: #{tpu_custom_call.1} parent=1 // pred_region
      _
    $region13: #{tpu_custom_call.1} parent=1 // pred_fallthru
      _
    // Predicated region
    $region14: #{tpu_custom_call.1} parent=1 // pred_check
      _
    $region15: #{tpu_custom_call.1} parent=1 // pred_check_branch
      %19 = sbr.rel (0) target = $region17
    $region16: #{tpu_custom_call.1} parent=1 // pred_region
      _
    $region17: #{tpu_custom_call.1} parent=1 // pred_fallthru
      _
    // Predicated region
    $region18: #{tpu_custom_call.1} parent=1 // pred_check
      _
    $region19: #{tpu_custom_call.1} parent=1 // pred_check_branch
      %21 = sbr.rel (0) target = $region21
    $region20: #{tpu_custom_call.1} parent=1 // pred_region
      _
    $region21: #{tpu_custom_call.1} parent=1 // pred_fallthru
      _
    %v22 = vld [vmem:[%s1] sm:$0xff]
    %v23 = vld [vmem:[%s1 + $0x8] sm:$0xff]
    %v24 = vld [vmem:[%s1 + $0x10] sm:$0xff]
    %v25 = vld [vmem:[%s1 + $0x18] sm:$0xff]
    %v26 = vld [vmem:[%s0] sm:$0xff]
    %v27 = vld [vmem:[%s2] sm:$0xff]
    %v28 = vld [vmem:[%s2 + $0x8] sm:$0xff]
    %v29 = vld [vmem:[%s2 + $0x10] sm:$0xff]
    %v30 = vld [vmem:[%s2 + $0x18] sm:$0xff]
    %32 = vset.pattern.permute.xlu0 0
    %33 = vperm.xlu0 %32, %v27
    %v34 = vpop.permute.xlu0 %33
    %37 = vset.pattern.permute.xlu0 0
    %38 = vperm.xlu0 %37, %v28
    %v39 = vpop.permute.xlu0 %38
    %42 = vset.pattern.permute.xlu0 0
    %43 = vperm.xlu0 %42, %v29
    %v44 = vpop.permute.xlu0 %43
    %47 = vset.pattern.permute.xlu0 0
    %48 = vperm.xlu0 %47, %v30
    %v49 = vpop.permute.xlu0 %48
    %vm51 = vcmask 261120
    %v53 = vsel %vm51, %v22, 0
    %v56 = vsel %vm51, %v23, 0
    %v59 = vsel %vm51, %v24, 0
    %v62 = vsel %vm51, %v25, 0
    %v65 = vsel %vm51, %v26, 0
    %67 = vmatprep.subr.mxu0 0.0
    %68 = vmatpush1.xpose.msra.mxu0 %v65
    %69 = vmatprep.subr.mxu0 0.0
    %70 = vmatpush1.xpose.msra.mxu0 0.0
    %71 = vmatprep.subr.mxu0 0.0
    %72 = vmatpush1.xpose.msra.mxu0 0.0
    %73 = vmatprep.subr.mxu0 0.0
    %74 = vmatpush1.xpose.msra.mxu0 0.0
    %75 = vmatprep.subr.mxu0 0.0
    %76 = vmatpush1.xpose.msra.mxu0 0.0
    %77 = vmatprep.subr.mxu0 0.0
    %78 = vmatpush1.xpose.msra.mxu0 0.0
    %79 = vmatprep.subr.mxu0 0.0
    %80 = vmatpush1.xpose.msra.mxu0 0.0
    %81 = vmatprep.subr.mxu0 0.0
    %82 = vmatpush1.xpose.msra.mxu0 0.0
    %83 = vmatprep.subr.mxu0 0.0
    %84 = vmatpush1.xpose.msra.mxu0 0.0
    %85 = vmatprep.subr.mxu0 0.0
    %86 = vmatpush1.xpose.msra.mxu0 0.0
    %87 = vmatprep.subr.mxu0 0.0
    %88 = vmatpush1.xpose.msra.mxu0 0.0
    %89 = vmatprep.subr.mxu0 0.0
    %90 = vmatpush1.xpose.msra.mxu0 0.0
    %91 = vmatprep.subr.mxu0 0.0
    %92 = vmatpush1.xpose.msra.mxu0 0.0
    %93 = vmatprep.subr.mxu0 0.0
    %94 = vmatpush1.xpose.msra.mxu0 0.0
    %95 = vmatprep.subr.mxu0 0.0
    %96 = vmatpush1.xpose.msra.mxu0 0.0
    %97 = vmatprep.subr.mxu0 0.0
    %98 = vmatpush1.xpose.msra.mxu0 0.0
    %99 = vmatprep.subr.mxu0 0.0
    %100 = vmatpush1.xpose.msra.mxu0 0.0
    %101 = vmatprep.subr.mxu0 0.0
    %102 = vmatpush1.xpose.msra.mxu0 0.0
    %103 = vmatprep.subr.mxu0 0.0
    %104 = vmatpush1.xpose.msra.mxu0 0.0
    %105 = vmatprep.subr.mxu0 0.0
    %106 = vmatpush1.xpose.msra.mxu0 0.0
    %107 = vmatprep.subr.mxu0 0.0
    %108 = vmatpush1.xpose.msra.mxu0 0.0
    %109 = vmatprep.subr.mxu0 0.0
    %110 = vmatpush1.xpose.msra.mxu0 0.0
    %111 = vmatprep.subr.mxu0 0.0
    %112 = vmatpush1.xpose.msra.mxu0 0.0
    %113 = vmatprep.subr.mxu0 0.0
    %114 = vmatpush1.xpose.msra.mxu0 0.0
    %115 = vmatprep.subr.mxu0 0.0
    %116 = vmatpush1.xpose.msra.mxu0 0.0
    %117 = vmatprep.subr.mxu0 0.0
    %118 = vmatpush1.xpose.msra.mxu0 0.0
    %119 = vmatprep.subr.mxu0 0.0
    %120 = vmatpush1.xpose.msra.mxu0 0.0
    %121 = vmatprep.subr.mxu0 0.0
    %122 = vmatpush1.xpose.msra.mxu0 0.0
    %123 = vmatprep.subr.mxu0 0.0
    %124 = vmatpush1.xpose.msra.mxu0 0.0
    %125 = vmatprep.subr.mxu0 0.0
    %126 = vmatpush1.xpose.msra.mxu0 0.0
    %127 = vmatprep.subr.mxu0 0.0
    %128 = vmatpush1.xpose.msra.mxu0 0.0
    %129 = vmatprep.subr.mxu0 0.0
    %130 = vmatpush1.xpose.msra.mxu0 0.0
    %131 = vmatprep.mubr.f32.mxu0 0.0
    %132 = vmatmul.mubr.f32.gmra.mrb[0].mxu0 %v53
    %v133 = vpop.f32.mrb[0].mxu0
    %v134 = vadd.f32 %v34, %v133
    %v135 = vpop.f32.mrb[0].mxu0
    %136 = vmatprep.mubr.f32.mxu0 0.0
    %137 = vmatmul.mubr.f32.gmra.mrb[0].mxu0 %v56
    %v138 = vpop.f32.mrb[0].mxu0
    %v139 = vadd.f32 %v39, %v138
    %v140 = vpop.f32.mrb[0].mxu0
    %141 = vmatprep.mubr.f32.mxu0 0.0
    %142 = vmatmul.mubr.f32.gmra.mrb[0].mxu0 %v59
    %v143 = vpop.f32.mrb[0].mxu0
    %v144 = vadd.f32 %v44, %v143
    %v145 = vpop.f32.mrb[0].mxu0
    %146 = vmatprep.mubr.f32.mxu0 0.0
    %147 = vmatmul.mubr.f32.gmra.mrb[0].mxu0 %v62
    %v148 = vpop.f32.mrb[0].mxu0
    %v149 = vadd.f32 %v49, %v148
    %v150 = vpop.f32.mrb[0].mxu0
    %151 = vdwg.mxu0
    %v152 = vmax.f32 %v134, 0.0
    %v153 = vmax.f32 %v139, 0.0
    %v154 = vmax.f32 %v144, 0.0
    %v155 = vmax.f32 %v149, 0.0
    %v156 = vld [vmem:[%s3] sm:$0xff]
    %v157 = vld [vmem:[%s3 + $0x8] sm:$0xff]
    %v158 = vld [vmem:[%s3 + $0x10] sm:$0xff]
    %v159 = vld [vmem:[%s3 + $0x18] sm:$0xff]
    %161 = vset.pattern.permute.xlu0 0
    %162 = vperm.xlu0 %161, %v156
    %v163 = vpop.permute.xlu0 %162
    %166 = vset.pattern.permute.xlu0 0
    %167 = vperm.xlu0 %166, %v157
    %v168 = vpop.permute.xlu0 %167
    %171 = vset.pattern.permute.xlu0 0
    %172 = vperm.xlu0 %171, %v158
    %v173 = vpop.permute.xlu0 %172
    %176 = vset.pattern.permute.xlu0 0
    %177 = vperm.xlu0 %176, %v159
    %v178 = vpop.permute.xlu0 %177
    %v180 = vmul.f32 %v152, %v163
    %v181 = vmul.f32 %v153, %v168
    %v182 = vmul.f32 %v154, %v173
    %v183 = vmul.f32 %v155, %v178
    %vm184 = vcmask 64512
    %v185 = vsel %vm184, %v180, 0.0
    %v186 = vsel %vm184, %v181, 0.0
    %v187 = vadd.f32 %v185, %v186
    %v188 = vsel %vm184, %v182, 0.0
    %v189 = vadd.f32 %v187, %v188
    %v190 = vsel %vm184, %v183, 0.0
    %v191 = vadd.f32 %v189, %v190
    %v192 = vrot.slane %v191, 4
    %v193 = vadd.f32 %v191, %v192
    %v194 = vrot.slane %v193, 2
    %v195 = vadd.f32 %v193, %v194
    %v196 = vrot.slane %v195, 1
    %v197 = vadd.f32 %v195, %v196
    %s198 = sld [smem:[#allocation2]]
    %v199 = vstv %s198
    %v200 = vadd.f32 %v197, %v199
    %vm201 = vcmask 57344
    %202 = vst.msk [vmem:[#allocation3] sm:$0x1] %vm201, %v200
    // Predicated region
    $region22: #{tpu_custom_call.1} parent=1 // pred_check
      _
    $region23: #{tpu_custom_call.1} parent=1 // pred_check_branch
      %204 = sbr.rel (0) target = $region25
    $region24: #{tpu_custom_call.1} parent=1 // pred_region
      %s206 = ssub.s32 16, 16
      %207 = vsyncadd [#allocation4], %s206
      %s209 = sshll.u32 [#allocation3], 4
      %s210 = int_to_ptr.vmem [resolvable:$true] %s209
      %212 = dma.vmem_to_hbm [thread:$0]  %s210, 16, %s5, [#allocation4]
    $region25: #{tpu_custom_call.1} parent=1 // pred_fallthru
      _
    // Predicated region
    $region26: #{tpu_custom_call.1} parent=1 // pred_check
      _
    $region27: #{tpu_custom_call.1} parent=1 // pred_check_branch
      %214 = sbr.rel (0) target = $region29
    $region28: #{tpu_custom_call.1} parent=1 // pred_region
      %215 = dma.done [#allocation4], 16
    $region29: #{tpu_custom_call.1} parent=1 // pred_fallthru
      _
    %216 = vsyncpa [#allocation4], 1

</llo_original>
